<compile_context>
chip_gen: v7x
topology: tpu7x:2x2x1
jax: 0.10.0
libtpu: 0.0.40
codegen_flags: <defaults>
</compile_context>

<pallas_src>
import functools

import jax
import jax.numpy as jnp
from jax import lax
from jax.experimental import pallas as pl
from jax.experimental.pallas import tpu as pltpu

LANES = 128
MAX_BLOCK_ROWS = 512   # (512,128) f32 tile = 256 KiB/input/buffer; VMEM-safe on v7x
NUM_SLABS = 2          # leading "parallel" axis -> uses both TCs on megacore parts


def _nr_reciprocal(d):
    """EUP approx reciprocal refined with one Newton step (full f32 accuracy)."""
    r = pl.reciprocal(d, approx=True)
    return r * (2.0 - d * r)


def _mixed_loss_kernel(x_ref, t_ref, out_ref, *, gamma, n_total, block_rows,
                       blocks_per_slab):
    c = pl.program_id(0)   # slab (parallel axis, one per core on megacore)
    i = pl.program_id(1)   # block within slab (arbitrary / accumulation axis)

    @pl.when(i == 0)
    def _():
        out_ref[...] = jnp.zeros_like(out_ref)

    x = x_ref[...].astype(jnp.float32)
    t = t_ref[...].astype(jnp.float32)

    # ---- focal elementwise term (numerically stable, EUP-lean) --------------
    # bce = softplus(x) - x*t  (identical to the PyTorch max/exp/log form)
    e = jnp.exp(-jnp.abs(x))                  # exp #1, reused below
    log_term = jnp.log(1.0 + e)               # log #1 (same naive form as ref)
    bce = jnp.maximum(x, 0.0) - x * t + log_term

    # sigmoid(x), reusing e = exp(-|x|)
    sig = jnp.where(x >= 0.0, 1.0, e) * _nr_reciprocal(1.0 + e)

    # focal factor = sigmoid(z) ** gamma,  z = -x * (2t - 1)
    z = -x * (t * 2.0 - 1.0)
    ez = jnp.exp(-jnp.abs(z))                 # exp #2
    p = jnp.where(z >= 0.0, 1.0, ez) * _nr_reciprocal(1.0 + ez)

    gamma_f = float(gamma)
    if gamma_f.is_integer() and 0 <= gamma_f <= 8:
        n = int(gamma_f)
        if n == 0:
            factor = jnp.ones_like(p)
        else:
            factor = p
            for _ in range(n - 1):
                factor = factor * p
    else:
        # general fallback: exp(gamma * logsigmoid(z)), reusing ez
        log_sig = -(jnp.maximum(-z, 0.0) + jnp.log(1.0 + ez))
        factor = jnp.exp(gamma_f * log_sig)

    focal_elem = factor * bce

    # ---- lane-wise partial sums into the resident (8,128) slab --------------
    def accumulate(mask):
        if mask is None:
            fe, inter, s, tt = focal_elem, sig * t, sig, t
        else:
            fe = focal_elem * mask
            inter = sig * t * mask
            s = sig * mask
            tt = t * mask
        out_ref[0:1, :] += jnp.sum(fe, axis=0, keepdims=True)     # focal sum
        out_ref[1:2, :] += jnp.sum(inter, axis=0, keepdims=True)  # sum(sig * t)
        out_ref[2:3, :] += jnp.sum(s, axis=0, keepdims=True)      # sum(sig)
        out_ref[3:4, :] += jnp.sum(tt, axis=0, keepdims=True)     # sum(t)

    per_block = block_rows * LANES
    g = c * blocks_per_slab + i                # global block index
    needs_mask = g >= (n_total // per_block)   # only ragged-tail / padding blocks

    @pl.when(jnp.logical_not(needs_mask))
    def _():
        accumulate(None)

    @pl.when(needs_mask)
    def _():
        row_ids = lax.broadcasted_iota(jnp.int32, x.shape, 0)
        lane_ids = lax.broadcasted_iota(jnp.int32, x.shape, 1)
        flat = g * per_block + row_ids * LANES + lane_ids
        accumulate((flat < n_total).astype(jnp.float32))


def mixed_loss(x, target, *, alpha=10.0, gamma=2.0):
    """Pallas-backed equivalent of MixedLoss(alpha, gamma)(input, target)."""
    if x.shape != target.shape:
        raise ValueError("Target size must be the same as input size")
    n_total = int(x.size)

    xf = x.reshape(-1)
    tf = target.reshape(-1)
    # Keep float inputs in their native dtype (cast to f32 inside the kernel);
    # only non-float targets/inputs get a wrapper-side cast.
    if not jnp.issubdtype(xf.dtype, jnp.floating):
        xf = xf.astype(jnp.float32)
    if not jnp.issubdtype(tf.dtype, jnp.floating):
        tf = tf.astype(jnp.float32)

    n_rows = pl.cdiv(n_total, LANES)
    block_rows = min(MAX_BLOCK_ROWS, ((n_rows + 7) // 8) * 8)
    blocks_total = pl.cdiv(n_rows, block_rows)
    blocks_per_slab = pl.cdiv(blocks_total, NUM_SLABS)
    padded_rows = NUM_SLABS * blocks_per_slab * block_rows
    pad = padded_rows * LANES - n_total
    if pad:
        xf = jnp.pad(xf, (0, pad))
        tf = jnp.pad(tf, (0, pad))
    X = xf.reshape(padded_rows, LANES)
    T = tf.reshape(padded_rows, LANES)

    kernel = functools.partial(
        _mixed_loss_kernel,
        gamma=float(gamma),
        n_total=n_total,
        block_rows=block_rows,
        blocks_per_slab=blocks_per_slab,
    )

    partials = pl.pallas_call(
        kernel,
        out_shape=jax.ShapeDtypeStruct((NUM_SLABS * 8, LANES), jnp.float32),
        grid_spec=pltpu.PrefetchScalarGridSpec(
            num_scalar_prefetch=0,
            grid=(NUM_SLABS, blocks_per_slab),
            in_specs=[
                pl.BlockSpec((block_rows, LANES),
                             lambda c, i: (c * blocks_per_slab + i, 0)),
                pl.BlockSpec((block_rows, LANES),
                             lambda c, i: (c * blocks_per_slab + i, 0)),
            ],
            out_specs=pl.BlockSpec((8, LANES), lambda c, i: (c, 0)),
        ),
        compiler_params=pltpu.CompilerParams(
            dimension_semantics=("parallel", "arbitrary")),
    )(X, T)

    # Glue: lane reduction + 4-scalar combine (negligible work).
    row_sums = jnp.sum(partials, axis=1).reshape(NUM_SLABS, 8).sum(axis=0)
    focal_sum, intersection, sig_sum, t_sum = (
        row_sums[0], row_sums[1], row_sums[2], row_sums[3])

    focal = focal_sum / n_total                         # focal.mean()
    smooth = 1.0
    dice = (2.0 * intersection + smooth) / (sig_sum + t_sum + smooth)
    loss = alpha * focal - jnp.log(dice)
    return loss  # scalar; .mean() of a scalar is a no-op


def _reference_mixed_loss(x, target, alpha=10.0, gamma=2.0):
    """Pure-JAX reference mirroring the PyTorch module, for verification."""
    x = x.astype(jnp.float32)
    t = target.astype(jnp.float32)
    max_val = jnp.maximum(-x, 0.0)
    bce = x - x * t + max_val + jnp.log(jnp.exp(-max_val) + jnp.exp(-x - max_val))
    invprobs = jax.nn.log_sigmoid(-x * (t * 2.0 - 1.0))
    focal = jnp.mean(jnp.exp(invprobs * gamma) * bce)
    sig = jax.nn.sigmoid(x)
    dice = (2.0 * jnp.sum(sig * t) + 1.0) / (jnp.sum(sig) + jnp.sum(t) + 1.0)
    return alpha * focal - jnp.log(dice)


if __name__ == "__main__":
    key = jax.random.PRNGKey(0)
    k1, k2 = jax.random.split(key)

    # Small segmentation-style shapes: logits and binary mask target, NCHW.
    x = jax.random.normal(k1, (2, 4, 16, 16), dtype=jnp.float32)
    target = (jax.random.uniform(k2, (2, 4, 16, 16)) > 0.5).astype(jnp.float32)

    alpha, gamma = 10.0, 2.0

    loss = mixed_loss(x, target, alpha=alpha, gamma=gamma)
    loss = jax.block_until_ready(loss)

    ref = jax.block_until_ready(_reference_mixed_loss(x, target, alpha, gamma))
    assert jnp.allclose(loss, ref, rtol=1e-5, atol=1e-5), (loss, ref)

    print("KERNEL_OK")
</pallas_src>

<mosaic_0001>
module attributes {stable_mosaic.version = 11 : i64} {
  func.func @_mixed_loss_kernel(%arg0: i32, %arg1: i32, %arg2: memref<16x128xf32, #tpu.memory_space<vmem>>, %arg3: memref<16x128xf32, #tpu.memory_space<vmem>>, %arg4: memref<8x128xf32, #tpu.memory_space<vmem>>) attributes {dimension_semantics = [#tpu.dimension_semantics<parallel>, #tpu.dimension_semantics<arbitrary>], iteration_bounds = array<i64: 2, 1>, scalar_prefetch = 0 : i64, scratch_operands = 0 : i64, tpu.core_type = #tpu.core_type<tc>, window_params = [{transform_indices = @transform_0, window_bounds = array<i64: 16, 128>}, {transform_indices = @transform_1, window_bounds = array<i64: 16, 128>}, {transform_indices = @transform_2, window_bounds = array<i64: 8, 128>}]} {
    %c0_i32 = arith.constant 0 : i32
    %0 = arith.cmpi eq, %arg1, %c0_i32 : i32
    %1 = arith.extui %0 : i1 to i32
    %c0_i32_0 = arith.constant 0 : i32
    %2 = arith.cmpi ne, %1, %c0_i32_0 : i32
    scf.if %2 {
      %cst_21 = arith.constant 0.000000e+00 : f32
      %62 = vector.broadcast %cst_21 : f32 to vector<8x128xf32>
      %c0_22 = arith.constant 0 : index
      %c0_23 = arith.constant 0 : index
      %63 = vector.load %arg4[%c0_22, %c0_23] : memref<8x128xf32, #tpu.memory_space<vmem>>, vector<8x128xf32>
      tpu.vector_store %arg4[%c0_22, %c0_23], %62 {strides = array<i32>} : memref<8x128xf32, #tpu.memory_space<vmem>>, vector<8x128xf32>,
    } else {
    }
    %c0 = arith.constant 0 : index
    %c0_1 = arith.constant 0 : index
    %3 = vector.load %arg2[%c0, %c0_1] : memref<16x128xf32, #tpu.memory_space<vmem>>, vector<16x128xf32>
    %c0_2 = arith.constant 0 : index
    %c0_3 = arith.constant 0 : index
    %4 = vector.load %arg3[%c0_2, %c0_3] : memref<16x128xf32, #tpu.memory_space<vmem>>, vector<16x128xf32>
    %5 = math.absf %3 : vector<16x128xf32>
    %cst = arith.constant 0.000000e+00 : f32
    %6 = vector.broadcast %cst : f32 to vector<16x128xf32>
    %7 = arith.subf %6, %5 : vector<16x128xf32>
    %8 = math.exp %7 : vector<16x128xf32>
    %cst_4 = arith.constant 1.000000e+00 : f32
    %9 = vector.broadcast %cst_4 : f32 to vector<16x128xf32>
    %10 = arith.addf %9, %8 : vector<16x128xf32>
    %11 = math.log %10 : vector<16x128xf32>
    %cst_5 = arith.constant 0.000000e+00 : f32
    %12 = vector.broadcast %cst_5 : f32 to vector<16x128xf32>
    %13 = arith.maximumf %3, %12 : vector<16x128xf32>
    %14 = arith.mulf %3, %4 : vector<16x128xf32>
    %15 = arith.subf %13, %14 : vector<16x128xf32>
    %16 = arith.addf %15, %11 : vector<16x128xf32>
    %cst_6 = arith.constant 0.000000e+00 : f32
    %17 = vector.broadcast %cst_6 : f32 to vector<16x128xf32>
    %18 = arith.cmpf oge, %3, %17 : vector<16x128xf32>
    %cst_7 = arith.constant 1.000000e+00 : f32
    %19 = vector.broadcast %cst_7 : f32 to vector<16x128xf32>
    %20 = arith.select %18, %19, %8 : vector<16x128xi1>, vector<16x128xf32>
    %cst_8 = arith.constant 1.000000e+00 : f32
    %21 = vector.broadcast %cst_8 : f32 to vector<16x128xf32>
    %22 = arith.addf %21, %8 : vector<16x128xf32>
    %23 = tpu.reciprocal %22 {approx = true} : vector<16x128xf32> -> vector<16x128xf32>
    %24 = arith.mulf %22, %23 : vector<16x128xf32>
    %cst_9 = arith.constant 2.000000e+00 : f32
    %25 = vector.broadcast %cst_9 : f32 to vector<16x128xf32>
    %26 = arith.subf %25, %24 : vector<16x128xf32>
    %27 = arith.mulf %23, %26 : vector<16x128xf32>
    %28 = arith.mulf %20, %27 : vector<16x128xf32>
    %cst_10 = arith.constant 0.000000e+00 : f32
    %29 = vector.broadcast %cst_10 : f32 to vector<16x128xf32>
    %30 = arith.subf %29, %3 : vector<16x128xf32>
    %cst_11 = arith.constant 2.000000e+00 : f32
    %31 = vector.broadcast %cst_11 : f32 to vector<16x128xf32>
    %32 = arith.mulf %4, %31 : vector<16x128xf32>
    %cst_12 = arith.constant 1.000000e+00 : f32
    %33 = vector.broadcast %cst_12 : f32 to vector<16x128xf32>
    %34 = arith.subf %32, %33 : vector<16x128xf32>
    %35 = arith.mulf %30, %34 : vector<16x128xf32>
    %36 = math.absf %35 : vector<16x128xf32>
    %cst_13 = arith.constant 0.000000e+00 : f32
    %37 = vector.broadcast %cst_13 : f32 to vector<16x128xf32>
    %38 = arith.subf %37, %36 : vector<16x128xf32>
    %39 = math.exp %38 : vector<16x128xf32>
    %cst_14 = arith.constant 0.000000e+00 : f32
    %40 = vector.broadcast %cst_14 : f32 to vector<16x128xf32>
    %41 = arith.cmpf oge, %35, %40 : vector<16x128xf32>
    %cst_15 = arith.constant 1.000000e+00 : f32
    %42 = vector.broadcast %cst_15 : f32 to vector<16x128xf32>
    %43 = arith.select %41, %42, %39 : vector<16x128xi1>, vector<16x128xf32>
    %cst_16 = arith.constant 1.000000e+00 : f32
    %44 = vector.broadcast %cst_16 : f32 to vector<16x128xf32>
    %45 = arith.addf %44, %39 : vector<16x128xf32>
    %46 = tpu.reciprocal %45 {approx = true} : vector<16x128xf32> -> vector<16x128xf32>
    %47 = arith.mulf %45, %46 : vector<16x128xf32>
    %cst_17 = arith.constant 2.000000e+00 : f32
    %48 = vector.broadcast %cst_17 : f32 to vector<16x128xf32>
    %49 = arith.subf %48, %47 : vector<16x128xf32>
    %50 = arith.mulf %46, %49 : vector<16x128xf32>
    %51 = arith.mulf %43, %50 : vector<16x128xf32>
    %52 = arith.mulf %51, %51 : vector<16x128xf32>
    %53 = arith.mulf %52, %16 : vector<16x128xf32>
    %c1_i32 = arith.constant 1 : i32
    %54 = arith.muli %arg0, %c1_i32 : i32
    %55 = arith.addi %54, %arg1 : i32
    %c1_i32_18 = arith.constant 1 : i32
    %56 = arith.cmpi sge, %55, %c1_i32_18 : i32
    %true = arith.constant true
    %57 = arith.xori %56, %true : i1
    %58 = arith.extui %57 : i1 to i32
    %c0_i32_19 = arith.constant 0 : i32
    %59 = arith.cmpi ne, %58, %c0_i32_19 : i32
    scf.if %59 {
      %62 = arith.mulf %28, %4 : vector<16x128xf32>
      %c0_21 = arith.constant 0 : index
      %c0_22 = arith.constant 0 : index
      %63 = vector.load %arg4[%c0_21, %c0_22] : memref<8x128xf32, #tpu.memory_space<vmem>>, vector<1x128xf32>
      %cst_23 = arith.constant dense<0.000000e+00> : vector<128xf32>
      %64 = vector.multi_reduction <add>, %53, %cst_23 [0] : vector<16x128xf32> to vector<128xf32>
      %65 = vector.shape_cast %64 : vector<128xf32> to vector<1x128xf32>
      %66 = arith.addf %63, %65 : vector<1x128xf32>
      %c0_24 = arith.constant 0 : index
      %c0_25 = arith.constant 0 : index
      %67 = vector.load %arg4[%c0_24, %c0_25] : memref<8x128xf32, #tpu.memory_space<vmem>>, vector<1x128xf32>
      tpu.vector_store %arg4[%c0_24, %c0_25], %66 {strides = array<i32>} : memref<8x128xf32, #tpu.memory_space<vmem>>, vector<1x128xf32>,
      %c1 = arith.constant 1 : index
      %c0_26 = arith.constant 0 : index
      %68 = vector.load %arg4[%c1, %c0_26] : memref<8x128xf32, #tpu.memory_space<vmem>>, vector<1x128xf32>
      %cst_27 = arith.constant dense<0.000000e+00> : vector<128xf32>
      %69 = vector.multi_reduction <add>, %62, %cst_27 [0] : vector<16x128xf32> to vector<128xf32>
      %70 = vector.shape_cast %69 : vector<128xf32> to vector<1x128xf32>
      %71 = arith.addf %68, %70 : vector<1x128xf32>
      %c1_28 = arith.constant 1 : index
      %c0_29 = arith.constant 0 : index
      %72 = vector.load %arg4[%c1_28, %c0_29] : memref<8x128xf32, #tpu.memory_space<vmem>>, vector<1x128xf32>
      tpu.vector_store %arg4[%c1_28, %c0_29], %71 {strides = array<i32>} : memref<8x128xf32, #tpu.memory_space<vmem>>, vector<1x128xf32>,
      %c2 = arith.constant 2 : index
      %c0_30 = arith.constant 0 : index
      %73 = vector.load %arg4[%c2, %c0_30] : memref<8x128xf32, #tpu.memory_space<vmem>>, vector<1x128xf32>
      %cst_31 = arith.constant dense<0.000000e+00> : vector<128xf32>
      %74 = vector.multi_reduction <add>, %28, %cst_31 [0] : vector<16x128xf32> to vector<128xf32>
      %75 = vector.shape_cast %74 : vector<128xf32> to vector<1x128xf32>
      %76 = arith.addf %73, %75 : vector<1x128xf32>
      %c2_32 = arith.constant 2 : index
      %c0_33 = arith.constant 0 : index
      %77 = vector.load %arg4[%c2_32, %c0_33] : memref<8x128xf32, #tpu.memory_space<vmem>>, vector<1x128xf32>
      tpu.vector_store %arg4[%c2_32, %c0_33], %76 {strides = array<i32>} : memref<8x128xf32, #tpu.memory_space<vmem>>, vector<1x128xf32>,
      %c3 = arith.constant 3 : index
      %c0_34 = arith.constant 0 : index
      %78 = vector.load %arg4[%c3, %c0_34] : memref<8x128xf32, #tpu.memory_space<vmem>>, vector<1x128xf32>
      %cst_35 = arith.constant dense<0.000000e+00> : vector<128xf32>
      %79 = vector.multi_reduction <add>, %4, %cst_35 [0] : vector<16x128xf32> to vector<128xf32>
      %80 = vector.shape_cast %79 : vector<128xf32> to vector<1x128xf32>
      %81 = arith.addf %78, %80 : vector<1x128xf32>
      %c3_36 = arith.constant 3 : index
      %c0_37 = arith.constant 0 : index
      %82 = vector.load %arg4[%c3_36, %c0_37] : memref<8x128xf32, #tpu.memory_space<vmem>>, vector<1x128xf32>
      tpu.vector_store %arg4[%c3_36, %c0_37], %81 {strides = array<i32>} : memref<8x128xf32, #tpu.memory_space<vmem>>, vector<1x128xf32>,
    } else {
    }
    %60 = arith.extui %56 : i1 to i32
    %c0_i32_20 = arith.constant 0 : i32
    %61 = arith.cmpi ne, %60, %c0_i32_20 : i32
    scf.if %61 {
      %62 = tpu.iota {dimensions = array<i32: 0>} : vector<16x128xi32>
      %63 = tpu.iota {dimensions = array<i32: 1>} : vector<16x128xi32>
      %c2048_i32 = arith.constant 2048 : i32
      %64 = arith.muli %55, %c2048_i32 : i32
      %c128_i32 = arith.constant 128 : i32
      %65 = vector.broadcast %c128_i32 : i32 to vector<16x128xi32>
      %66 = arith.muli %62, %65 : vector<16x128xi32>
      %67 = vector.broadcast %64 : i32 to vector<16x128xi32>
      %68 = arith.addi %67, %66 : vector<16x128xi32>
      %69 = arith.addi %68, %63 : vector<16x128xi32>
      %c2048_i32_21 = arith.constant 2048 : i32
      %70 = vector.broadcast %c2048_i32_21 : i32 to vector<16x128xi32>
      %71 = arith.cmpi slt, %69, %70 : vector<16x128xi32>
      %72 = arith.extui %71 : vector<16x128xi1> to vector<16x128xi32>
      %73 = arith.sitofp %72 : vector<16x128xi32> to vector<16x128xf32>
      %74 = arith.mulf %53, %73 : vector<16x128xf32>
      %75 = arith.mulf %28, %4 : vector<16x128xf32>
      %76 = arith.mulf %75, %73 : vector<16x128xf32>
      %77 = arith.mulf %28, %73 : vector<16x128xf32>
      %78 = arith.mulf %4, %73 : vector<16x128xf32>
      %c0_22 = arith.constant 0 : index
      %c0_23 = arith.constant 0 : index
      %79 = vector.load %arg4[%c0_22, %c0_23] : memref<8x128xf32, #tpu.memory_space<vmem>>, vector<1x128xf32>
      %cst_24 = arith.constant dense<0.000000e+00> : vector<128xf32>
      %80 = vector.multi_reduction <add>, %74, %cst_24 [0] : vector<16x128xf32> to vector<128xf32>
      %81 = vector.shape_cast %80 : vector<128xf32> to vector<1x128xf32>
      %82 = arith.addf %79, %81 : vector<1x128xf32>
      %c0_25 = arith.constant 0 : index
      %c0_26 = arith.constant 0 : index
      %83 = vector.load %arg4[%c0_25, %c0_26] : memref<8x128xf32, #tpu.memory_space<vmem>>, vector<1x128xf32>
      tpu.vector_store %arg4[%c0_25, %c0_26], %82 {strides = array<i32>} : memref<8x128xf32, #tpu.memory_space<vmem>>, vector<1x128xf32>,
      %c1 = arith.constant 1 : index
      %c0_27 = arith.constant 0 : index
      %84 = vector.load %arg4[%c1, %c0_27] : memref<8x128xf32, #tpu.memory_space<vmem>>, vector<1x128xf32>
      %cst_28 = arith.constant dense<0.000000e+00> : vector<128xf32>
      %85 = vector.multi_reduction <add>, %76, %cst_28 [0] : vector<16x128xf32> to vector<128xf32>
      %86 = vector.shape_cast %85 : vector<128xf32> to vector<1x128xf32>
      %87 = arith.addf %84, %86 : vector<1x128xf32>
      %c1_29 = arith.constant 1 : index
      %c0_30 = arith.constant 0 : index
      %88 = vector.load %arg4[%c1_29, %c0_30] : memref<8x128xf32, #tpu.memory_space<vmem>>, vector<1x128xf32>
      tpu.vector_store %arg4[%c1_29, %c0_30], %87 {strides = array<i32>} : memref<8x128xf32, #tpu.memory_space<vmem>>, vector<1x128xf32>,
      %c2 = arith.constant 2 : index
      %c0_31 = arith.constant 0 : index
      %89 = vector.load %arg4[%c2, %c0_31] : memref<8x128xf32, #tpu.memory_space<vmem>>, vector<1x128xf32>
      %cst_32 = arith.constant dense<0.000000e+00> : vector<128xf32>
      %90 = vector.multi_reduction <add>, %77, %cst_32 [0] : vector<16x128xf32> to vector<128xf32>
      %91 = vector.shape_cast %90 : vector<128xf32> to vector<1x128xf32>
      %92 = arith.addf %89, %91 : vector<1x128xf32>
      %c2_33 = arith.constant 2 : index
      %c0_34 = arith.constant 0 : index
      %93 = vector.load %arg4[%c2_33, %c0_34] : memref<8x128xf32, #tpu.memory_space<vmem>>, vector<1x128xf32>
      tpu.vector_store %arg4[%c2_33, %c0_34], %92 {strides = array<i32>} : memref<8x128xf32, #tpu.memory_space<vmem>>, vector<1x128xf32>,
      %c3 = arith.constant 3 : index
      %c0_35 = arith.constant 0 : index
      %94 = vector.load %arg4[%c3, %c0_35] : memref<8x128xf32, #tpu.memory_space<vmem>>, vector<1x128xf32>
      %cst_36 = arith.constant dense<0.000000e+00> : vector<128xf32>
      %95 = vector.multi_reduction <add>, %78, %cst_36 [0] : vector<16x128xf32> to vector<128xf32>
      %96 = vector.shape_cast %95 : vector<128xf32> to vector<1x128xf32>
      %97 = arith.addf %94, %96 : vector<1x128xf32>
      %c3_37 = arith.constant 3 : index
      %c0_38 = arith.constant 0 : index
      %98 = vector.load %arg4[%c3_37, %c0_38] : memref<8x128xf32, #tpu.memory_space<vmem>>, vector<1x128xf32>
      tpu.vector_store %arg4[%c3_37, %c0_38], %97 {strides = array<i32>} : memref<8x128xf32, #tpu.memory_space<vmem>>, vector<1x128xf32>,
    } else {
    }
    return
  }
  func.func @transform_0(%arg0: i32, %arg1: i32) -> (i32, i32) {
    %c1_i32 = arith.constant 1 : i32
    %0 = arith.muli %arg0, %c1_i32 : i32
    %1 = arith.addi %0, %arg1 : i32
    %c0_i32 = arith.constant 0 : i32
    %c0_i32_0 = arith.constant 0 : i32
    return %1, %c0_i32 : i32, i32
  }
  func.func @transform_1(%arg0: i32, %arg1: i32) -> (i32, i32) {
    %c1_i32 = arith.constant 1 : i32
    %0 = arith.muli %arg0, %c1_i32 : i32
    %1 = arith.addi %0, %arg1 : i32
    %c0_i32 = arith.constant 0 : i32
    %c0_i32_0 = arith.constant 0 : i32
    return %1, %c0_i32 : i32, i32
  }
  func.func @transform_2(%arg0: i32, %arg1: i32) -> (i32, i32) {
    %c0_i32 = arith.constant 0 : i32
    %c0_i32_0 = arith.constant 0 : i32
    return %arg0, %c0_i32 : i32, i32
  }
}

</mosaic_0001>

<llo_original>
// kernel: tpu_custom_call.1
$region0: #{tpu_custom_call.1}
  #allocation0 [shape = 'u32[]', space=smem, size = 0x4, offset = 0x4, fixed_abs, tag = 'smem constant byte address 0x4 - core index']
  #allocation1 [shape = 'u32[144,128]{1,0:T(1,128)}', space=vmem, size = 0x12000, scoped, tag = 'internal scratch']
  %s0 = inlined_call_operand.hbm [shape: f32[32,128], index: 0, kind: input, shape index: {}]
  %s1 = inlined_call_operand.hbm [shape: f32[32,128], index: 1, kind: input, shape index: {}]
  %s2 = inlined_call_operand.hbm [shape: f32[16,128], index: 2, kind: output, shape index: {}]
  %s3 = sld [smem:[#allocation0]]
  $region61: #{tpu_custom_call.1} parent=0
    _
  %s5 = ssub.s32 1, %s3
  %s6 = scalar_select 0, %s5, %s3
  $region1: #{tpu_custom_call.1} parent=0
    #allocation2 [shape = 'u8[16384]{0}', space=vmem, size = 0x4000, scoped, tag = 'input window, operand 0']
    #allocation3 [shape = 's32[2]{0}', space=sflag, size = 0x8, scoped, tag = 'scoped memory for tpu_custom_call.1']
    #allocation4 [shape = 's32[2]{0}', space=sflag, size = 0x8, scoped, tag = 'scoped memory for tpu_custom_call.1']
    #allocation5 [shape = 'u8[16384]{0}', space=vmem, size = 0x4000, scoped, tag = 'input window, operand 1']
    #allocation6 [shape = 's32[2]{0}', space=sflag, size = 0x8, scoped, tag = 'scoped memory for tpu_custom_call.1']
    #allocation7 [shape = 'u8[8192]{0}', space=vmem, size = 0x2000, scoped, tag = 'output window, operand 0']
    %7 = vsyncpa [#allocation3], 0
    %s8 = scalar_lea.sflag [#allocation3], 1
    %9 = vsyncpa %s8, 0
    %10 = vsyncpa [#allocation6], 0
    %s11 = scalar_lea.sflag [#allocation6], 1
    %12 = vsyncpa %s11, 0
    %13 = vsyncpa [#allocation4], 0
    %s14 = scalar_lea.sflag [#allocation4], 1
    %15 = vsyncpa %s14, 0
    loop: start=0, step=1, limit=4
    $region2: #{tpu_custom_call.1} parent=1 // loop_pre_header
      _
    $region3: #{tpu_custom_call.1} parent=1 // loop_header
      %s17 = sphi 0, %s21
      %p18 = scmp.ge.s32.totalorder %s17, 4
      %s24 = sphi 0, %s36
      %s25 = sphi 0, %s32
      %s26 = sphi 0, %s24
      %s27 = sphi 0, %s25
      %s28 = sphi 0, %s26
      %s29 = sphi 0, %s27
      %s41 = sphi 0, %s43
      %s44 = sphi 0, %s41
      %s45 = sphi 0, %s44
      %s61 = sphi 0, %s45
      %s69 = sphi 0, %s71
      %s72 = sphi 0, %s69
      %s73 = sphi 0, %s72
      %s89 = sphi 0, %s73
      %s95 = sphi 0, %s97
      %s98 = sphi 0, %s95
      %s99 = sphi 0, %s98
      %s115 = sphi 0, %s99
    $region4: #{tpu_custom_call.1} parent=1 // loop_header_branch
      %20 = sbr.rel (%p18) target = $region8
    $region5: #{tpu_custom_call.1} parent=1 // loop_body
      %s22 = ssub.s32 %s17, 1
      %s23 = ssub.s32 %s17, 2
      %s30 = sadd.s32 1, %s25
      %p31 = scmp.ge.s32.totalorder %s30, 1
      %s32 = scalar_select %p31, 0, %s30
      %s33 = sadd.s32 1, %s24
      %s34 = scalar_select %p31, %s33, %s24
      %p35 = scmp.ge.s32.totalorder %s34, 2
      %s36 = scalar_select %p35, 0, %s34
      %s37 = sadd.s32 %s24, %s25
      %s38 = sadd.s32 %s36, %s32
      %s39 = ssub.s32 %s37, %s38
      %p40 = scmp.eq.s32.totalorder %s39, 0
      %s42 = sadd.s32 %s41, 1
      %s43 = scalar_select %p40, %s41, %s42
      %p46 = pneg %p40
      %p47 = scmp.eq.s32.totalorder %s17, 1
      %p48 = por %p46, %p47
      %p49 = scmp.ne.s32.totalorder %s41, %s44
      %p50 = scmp.eq.s32.totalorder %s17, 0
      %p51 = por %p49, %p50
      %p52 = scmp.ne.s32.totalorder %s41, %s44
      %p53 = scmp.eq.s32.totalorder %s22, 1
      %p54 = por %p52, %p53
      %p55 = scmp.ne.s32.totalorder %s44, %s45
      %p56 = scmp.eq.s32.totalorder %s22, 0
      %p57 = por %p55, %p56
      %p58 = scmp.ne.s32.totalorder %s44, %s45
      %p59 = scmp.eq.s32.totalorder %s23, 1
      %p60 = por %p58, %p59
      %p62 = scmp.ne.s32.totalorder %s45, %s61
      %p63 = scmp.eq.s32.totalorder %s23, 0
      %p64 = por %p62, %p63
      %s65 = sadd.s32 %s24, %s25
      %s66 = sadd.s32 %s36, %s32
      %s67 = ssub.s32 %s65, %s66
      %p68 = scmp.eq.s32.totalorder %s67, 0
      %s70 = sadd.s32 %s69, 1
      %s71 = scalar_select %p68, %s69, %s70
      %p74 = pneg %p68
      %p75 = scmp.eq.s32.totalorder %s17, 1
      %p76 = por %p74, %p75
      %p77 = scmp.ne.s32.totalorder %s69, %s72
      %p78 = scmp.eq.s32.totalorder %s17, 0
      %p79 = por %p77, %p78
      %p80 = scmp.ne.s32.totalorder %s69, %s72
      %p81 = scmp.eq.s32.totalorder %s22, 1
      %p82 = por %p80, %p81
      %p83 = scmp.ne.s32.totalorder %s72, %s73
      %p84 = scmp.eq.s32.totalorder %s22, 0
      %p85 = por %p83, %p84
      %p86 = scmp.ne.s32.totalorder %s72, %s73
      %p87 = scmp.eq.s32.totalorder %s23, 1
      %p88 = por %p86, %p87
      %p90 = scmp.ne.s32.totalorder %s73, %s89
      %p91 = scmp.eq.s32.totalorder %s23, 0
      %p92 = por %p90, %p91
      %s93 = ssub.s32 %s24, %s36
      %p94 = scmp.eq.s32.totalorder %s93, 0
      %s96 = sadd.s32 %s95, 1
      %s97 = scalar_select %p94, %s95, %s96
      %p100 = pneg %p94
      %p101 = scmp.eq.s32.totalorder %s17, 1
      %p102 = por %p100, %p101
      %p103 = scmp.ne.s32.totalorder %s95, %s98
      %p104 = scmp.eq.s32.totalorder %s17, 0
      %p105 = por %p103, %p104
      %p106 = scmp.ne.s32.totalorder %s95, %s98
      %p107 = scmp.eq.s32.totalorder %s22, 1
      %p108 = por %p106, %p107
      %p109 = scmp.ne.s32.totalorder %s98, %s99
      %p110 = scmp.eq.s32.totalorder %s22, 0
      %p111 = por %p109, %p110
      %p112 = scmp.ne.s32.totalorder %s98, %s99
      %p113 = scmp.eq.s32.totalorder %s23, 1
      %p114 = por %p112, %p113
      %p116 = scmp.ne.s32.totalorder %s99, %s115
      %p117 = scmp.eq.s32.totalorder %s23, 0
      %p118 = por %p116, %p117
      %p119 = scmp.le.s32.totalorder 1, %s17
      %p120 = scmp.lt.s32.totalorder %s17, 3
      %p121 = pnand %p119, %p120
      %p122 = pneg %p121
      // Predicated region
      $region9: #{tpu_custom_call.1} parent=5 // pred_check
        _
      $region10: #{tpu_custom_call.1} parent=5 // pred_check_branch
        %124 = sbr.rel (%p121) target = $region12
      $region11: #{tpu_custom_call.1} parent=5 // pred_region
        %s125 = ssub.s32 %s17, 1
      $region12: #{tpu_custom_call.1} parent=5 // pred_fallthru
        _
      %p126 = scmp.lt.s32.totalorder %s17, 2
      // Predicated region
      $region13: #{tpu_custom_call.1} parent=5 // pred_check
        %p127 = pneg %p126
      $region14: #{tpu_custom_call.1} parent=5 // pred_check_branch
        %129 = sbr.rel (%p127) target = $region16
      $region15: #{tpu_custom_call.1} parent=5 // pred_region
        // Predicated region
        $region17: #{tpu_custom_call.1} parent=15 // pred_check
          %p130 = pneg %p51
        $region18: #{tpu_custom_call.1} parent=15 // pred_check_branch
          %132 = sbr.rel (%p130) target = $region20
        $region19: #{tpu_custom_call.1} parent=15 // pred_region
          %s133 = sand.u32 %s41, 1
          %s134 = scalar_lea.sflag [#allocation3], %s133
          %s135 = sand.u32 %s41, 1
          %s136 = smul.addr %s135, 16
          %s137 = scalar_lea.vmem [#allocation2], %s136
          %s138 = sadd.s32 %s24, %s25
          %s139 = smul.u32 2, %s138
          %s141 = ssub.s32 256, 256
          %142 = vsyncadd %s134, %s141
          %s143 = smul.addr %s139, 128
          %s144 = scalar_lea.hbm %s0, %s143
          %s145 = sshll.u32 %s137, 4
          %s146 = int_to_ptr.vmem [resolvable:$true] %s145
          %151 = dma.hbm_to_vmem [thread:$0]  %s144, 256, %s146, %s134, 128, 128, 8
        $region20: #{tpu_custom_call.1} parent=15 // pred_fallthru
          _
        // Predicated region
        $region21: #{tpu_custom_call.1} parent=15 // pred_check
          %p152 = pneg %p79
        $region22: #{tpu_custom_call.1} parent=15 // pred_check_branch
          %154 = sbr.rel (%p152) target = $region24
        $region23: #{tpu_custom_call.1} parent=15 // pred_region
          %s155 = sand.u32 %s69, 1
          %s156 = scalar_lea.sflag [#allocation6], %s155
          %s157 = sand.u32 %s69, 1
          %s158 = smul.addr %s157, 16
          %s159 = scalar_lea.vmem [#allocation5], %s158
          %s160 = sadd.s32 %s24, %s25
          %s161 = smul.u32 2, %s160
          %s163 = ssub.s32 256, 256
          %164 = vsyncadd %s156, %s163
          %s165 = smul.addr %s161, 128
          %s166 = scalar_lea.hbm %s1, %s165
          %s167 = sshll.u32 %s159, 4
          %s168 = int_to_ptr.vmem [resolvable:$true] %s167
          %173 = dma.hbm_to_vmem [thread:$0]  %s166, 256, %s168, %s156, 128, 128, 8
        $region24: #{tpu_custom_call.1} parent=15 // pred_fallthru
          _
      $region16: #{tpu_custom_call.1} parent=5 // pred_fallthru
        _
      %p174 = scmp.le.s32.totalorder 1, %s17
      %p175 = scmp.lt.s32.totalorder %s17, 3
      %p176 = pnand %p174, %p175
      %p177 = pneg %p176
      // Predicated region
      $region25: #{tpu_custom_call.1} parent=5 // pred_check
        _
      $region26: #{tpu_custom_call.1} parent=5 // pred_check_branch
        %179 = sbr.rel (%p176) target = $region28
      $region27: #{tpu_custom_call.1} parent=5 // pred_region
        %s180 = ssub.s32 %s17, 1
        %s181 = sand.u32 %s44, 1
        %s182 = scalar_lea.sflag [#allocation3], %s181
        %s183 = sand.u32 %s44, 1
        %s184 = smul.addr %s183, 16
        %s185 = scalar_lea.vmem [#allocation2], %s184
        // Predicated region
        $region29: #{tpu_custom_call.1} parent=27 // pred_check
          %p186 = pneg %p57
        $region30: #{tpu_custom_call.1} parent=27 // pred_check_branch
          %188 = sbr.rel (%p186) target = $region32
        $region31: #{tpu_custom_call.1} parent=27 // pred_region
          %189 = dma.done %s182, 256
        $region32: #{tpu_custom_call.1} parent=27 // pred_fallthru
          _
        %s190 = sand.u32 %s72, 1
        %s191 = scalar_lea.sflag [#allocation6], %s190
        %s192 = sand.u32 %s72, 1
        %s193 = smul.addr %s192, 16
        %s194 = scalar_lea.vmem [#allocation5], %s193
        // Predicated region
        $region33: #{tpu_custom_call.1} parent=27 // pred_check
          %p195 = pneg %p85
        $region34: #{tpu_custom_call.1} parent=27 // pred_check_branch
          %197 = sbr.rel (%p195) target = $region36
        $region35: #{tpu_custom_call.1} parent=27 // pred_region
          %198 = dma.done %s191, 256
        $region36: #{tpu_custom_call.1} parent=27 // pred_fallthru
          _
        %s199 = sand.u32 %s44, 1
        %s200 = scalar_lea.sflag [#allocation3], %s199
        %s201 = sand.u32 %s44, 1
        %s202 = smul.addr %s201, 16
        %s203 = scalar_lea.vmem [#allocation2], %s202
        %p204 = pneg %p57
        %p205 = pneg %p54
        %s206 = sand.u32 %s72, 1
        %s207 = scalar_lea.sflag [#allocation6], %s206
        %s208 = sand.u32 %s72, 1
        %s209 = smul.addr %s208, 16
        %s210 = scalar_lea.vmem [#allocation5], %s209
        %p211 = pneg %p85
        %p212 = pneg %p82
        %p213 = pneg %p111
        %p214 = pneg %p108
        %s215 = sand.u32 %s98, 1
        %s216 = scalar_lea.sflag [#allocation4], %s215
        %s217 = sand.u32 %s98, 1
        %s218 = smul.addr %s217, 8
        %s219 = scalar_lea.vmem [#allocation7], %s218
        %s220 = sadd.s32 %s26, %s27
        %s221 = smul.u32 2, %s220
        %s222 = sadd.s32 %s26, %s27
        %s223 = smul.u32 2, %s222
        %p224 = scmp.eq.s32.totalorder %s27, 0
        // Predicated region
        $region37: #{tpu_custom_call.1} parent=27 // pred_check
          %p225 = pneg %p224
        $region38: #{tpu_custom_call.1} parent=27 // pred_check_branch
          %227 = sbr.rel (%p225) target = $region40
        $region39: #{tpu_custom_call.1} parent=27 // pred_region
          %228 = vst [vmem:[%s219] sm:$0xff] 0.0
        $region40: #{tpu_custom_call.1} parent=27 // pred_fallthru
          _
        %v229 = vld [vmem:[%s185] sm:$0xff]
        %v230 = vld [vmem:[%s185 + $0x8] sm:$0xff]
        %v231 = vld [vmem:[%s194] sm:$0xff]
        %v232 = vld [vmem:[%s194 + $0x8] sm:$0xff]
        %v233 = vand.u32 2147483647, %v229
        %v234 = vand.u32 2147483647, %v230
        %v235 = vsub.f32 0.0, %v233
        %v236 = vsub.f32 0.0, %v234
        %v237 = vmul.f32 %v235, 1.442695
        %v238 = vpow.pop %v237
        %v239 = vmul.f32 %v236, 1.442695
        %v240 = vpow.pop %v239
        %v241 = vadd.f32 %v238, 1.0
        %v242 = vadd.f32 %v240, 1.0
        %v243 = vlog2.pop %v241
        %v244 = vmul.f32 %v243, 0.6931472
        %v245 = vlog2.pop %v242
        %v246 = vmul.f32 %v245, 0.6931472
        %v247 = vmax.f32 %v229, 0.0
        %v248 = vmax.f32 %v230, 0.0
        %v249 = vmul.f32 %v229, %v231
        %v250 = vmul.f32 %v230, %v232
        %v251 = vsub.f32 %v247, %v249
        %v252 = vsub.f32 %v248, %v250
        %v253 = vadd.f32 %v251, %v244
        %v254 = vadd.f32 %v252, %v246
        %vm255 = vcmp.ge.f32.partialorder %v229, 0.0
        %vm256 = vcmp.ge.f32.partialorder %v230, 0.0
        %v257 = vsel %vm255, 1.0, %v238
        %v258 = vsel %vm256, 1.0, %v240
        %v259 = vrcp.pop %v241
        %v260 = vrcp.pop %v242
        %v261 = vmul.f32 %v241, %v259
        %v262 = vmul.f32 %v242, %v260
        %v263 = vsub.f32 2.0, %v261
        %v264 = vsub.f32 2.0, %v262
        %v265 = vmul.f32 %v259, %v263
        %v266 = vmul.f32 %v260, %v264
        %v267 = vmul.f32 %v257, %v265
        %v268 = vmul.f32 %v258, %v266
        %v269 = vsub.f32 0.0, %v229
        %v270 = vsub.f32 0.0, %v230
        %v271 = vmul.f32 %v231, 2.0
        %v272 = vmul.f32 %v232, 2.0
        %v273 = vsub.f32 %v271, 1.0
        %v274 = vsub.f32 %v272, 1.0
        %v275 = vmul.f32 %v269, %v273
        %v276 = vmul.f32 %v270, %v274
        %v277 = vand.u32 2147483647, %v275
        %v278 = vand.u32 2147483647, %v276
        %v279 = vsub.f32 0.0, %v277
        %v280 = vsub.f32 0.0, %v278
        %v281 = vmul.f32 %v279, 1.442695
        %v282 = vpow.pop %v281
        %v283 = vmul.f32 %v280, 1.442695
        %v284 = vpow.pop %v283
        %vm285 = vcmp.ge.f32.partialorder %v275, 0.0
        %vm286 = vcmp.ge.f32.partialorder %v276, 0.0
        %v287 = vsel %vm285, 1.0, %v282
        %v288 = vsel %vm286, 1.0, %v284
        %v289 = vadd.f32 %v282, 1.0
        %v290 = vadd.f32 %v284, 1.0
        %v291 = vrcp.pop %v289
        %v292 = vrcp.pop %v290
        %v293 = vmul.f32 %v289, %v291
        %v294 = vmul.f32 %v290, %v292
        %v295 = vsub.f32 2.0, %v293
        %v296 = vsub.f32 2.0, %v294
        %v297 = vmul.f32 %v291, %v295
        %v298 = vmul.f32 %v292, %v296
        %v299 = vmul.f32 %v287, %v297
        %v300 = vmul.f32 %v288, %v298
        %v301 = vmul.f32 %v299, %v299
        %v302 = vmul.f32 %v300, %v300
        %v303 = vmul.f32 %v301, %v253
        %v304 = vmul.f32 %v302, %v254
        %s305 = sadd.s32 %s26, %s27
        %p306 = scmp.ge.s32.totalorder %s305, 1
        %p307 = scmp.lt.s32.totalorder %s305, 1
        // Predicated region
        $region41: #{tpu_custom_call.1} parent=27 // pred_check
          %p308 = pneg %p307
        $region42: #{tpu_custom_call.1} parent=27 // pred_check_branch
          %310 = sbr.rel (%p308) target = $region44
        $region43: #{tpu_custom_call.1} parent=27 // pred_region
          %v311 = vmul.f32 %v267, %v231
          %v312 = vmul.f32 %v268, %v232
          %v313 = vld [vmem:[%s219] sm:$0x1]
          %v314 = vadd.f32 %v303, %v304
          %v315 = vrot.slane %v314, 4
          %v316 = vadd.f32 %v314, %v315
          %v317 = vrot.slane %v316, 2
          %v318 = vadd.f32 %v316, %v317
          %v319 = vrot.slane %v318, 1
          %v320 = vadd.f32 %v318, %v319
          %v321 = vadd.f32 %v313, %v320
          %322 = vst [vmem:[%s219] sm:$0x1] %v321
          %v323 = vld [vmem:[%s219 + $0x1] sm:$0x1]
          %v324 = vadd.f32 %v311, %v312
          %v325 = vrot.slane %v324, 4
          %v326 = vadd.f32 %v324, %v325
          %v327 = vrot.slane %v326, 2
          %v328 = vadd.f32 %v326, %v327
          %v329 = vrot.slane %v328, 1
          %v330 = vadd.f32 %v328, %v329
          %v331 = vadd.f32 %v323, %v330
          %332 = vst [vmem:[%s219 + $0x1] sm:$0x1] %v331
          %v333 = vld [vmem:[%s219 + $0x2] sm:$0x1]
          %v334 = vadd.f32 %v267, %v268
          %v335 = vrot.slane %v334, 4
          %v336 = vadd.f32 %v334, %v335
          %v337 = vrot.slane %v336, 2
          %v338 = vadd.f32 %v336, %v337
          %v339 = vrot.slane %v338, 1
          %v340 = vadd.f32 %v338, %v339
          %v341 = vadd.f32 %v333, %v340
          %342 = vst [vmem:[%s219 + $0x2] sm:$0x1] %v341
          %v343 = vld [vmem:[%s219 + $0x3] sm:$0x1]
          %v344 = vadd.f32 %v231, %v232
          %v345 = vrot.slane %v344, 4
          %v346 = vadd.f32 %v344, %v345
          %v347 = vrot.slane %v346, 2
          %v348 = vadd.f32 %v346, %v347
          %v349 = vrot.slane %v348, 1
          %v350 = vadd.f32 %v348, %v349
          %v351 = vadd.f32 %v343, %v350
          %352 = vst [vmem:[%s219 + $0x3] sm:$0x1] %v351
        $region44: #{tpu_custom_call.1} parent=27 // pred_fallthru
          _
        // Predicated region
        $region45: #{tpu_custom_call.1} parent=27 // pred_check
          %p353 = pneg %p306
        $region46: #{tpu_custom_call.1} parent=27 // pred_check_branch
          %355 = sbr.rel (%p353) target = $region48
        $region47: #{tpu_custom_call.1} parent=27 // pred_region
          %v356 = vlaneseq
          %v357 = vshrl.u32 %v356, 7
          %v358 = vadd.s32 %v357, 8
          %v359 = vlaneseq
          %v360 = vand.u32 %v359, 127
          %s361 = smul.u32 %s305, 2048
          %v362 = vmul.u32 %v357, 128
          %v363 = vmul.u32 %v358, 128
          %v364 = vstv %s361
          %v365 = vadd.s32 %v364, %v362
          %v366 = vadd.s32 %v364, %v363
          %v367 = vadd.s32 %v365, %v360
          %v368 = vadd.s32 %v366, %v360
          %vm369 = vcmp.lt.s32.totalorder %v367, 2048
          %vm370 = vcmp.lt.s32.totalorder %v368, 2048
          %v371 = vsel %vm369, 1, 0
          %v372 = vsel %vm370, 1, 0
          %v373 = vcvt.s32.f32 %v371
          %v374 = vcvt.s32.f32 %v372
          %v375 = vmul.f32 %v303, %v373
          %v376 = vmul.f32 %v304, %v374
          %v377 = vmul.f32 %v267, %v231
          %v378 = vmul.f32 %v268, %v232
          %v379 = vmul.f32 %v377, %v373
          %v380 = vmul.f32 %v378, %v374
          %v381 = vmul.f32 %v267, %v373
          %v382 = vmul.f32 %v268, %v374
          %v383 = vmul.f32 %v231, %v373
          %v384 = vmul.f32 %v232, %v374
          %v385 = vld [vmem:[%s219] sm:$0x1]
          %v386 = vadd.f32 %v375, %v376
          %v387 = vrot.slane %v386, 4
          %v388 = vadd.f32 %v386, %v387
          %v389 = vrot.slane %v388, 2
          %v390 = vadd.f32 %v388, %v389
          %v391 = vrot.slane %v390, 1
          %v392 = vadd.f32 %v390, %v391
          %v393 = vadd.f32 %v385, %v392
          %394 = vst [vmem:[%s219] sm:$0x1] %v393
          %v395 = vld [vmem:[%s219 + $0x1] sm:$0x1]
          %v396 = vadd.f32 %v379, %v380
          %v397 = vrot.slane %v396, 4
          %v398 = vadd.f32 %v396, %v397
          %v399 = vrot.slane %v398, 2
          %v400 = vadd.f32 %v398, %v399
          %v401 = vrot.slane %v400, 1
          %v402 = vadd.f32 %v400, %v401
          %v403 = vadd.f32 %v395, %v402
          %404 = vst [vmem:[%s219 + $0x1] sm:$0x1] %v403
          %v405 = vld [vmem:[%s219 + $0x2] sm:$0x1]
          %v406 = vadd.f32 %v381, %v382
          %v407 = vrot.slane %v406, 4
          %v408 = vadd.f32 %v406, %v407
          %v409 = vrot.slane %v408, 2
          %v410 = vadd.f32 %v408, %v409
          %v411 = vrot.slane %v410, 1
          %v412 = vadd.f32 %v410, %v411
          %v413 = vadd.f32 %v405, %v412
          %414 = vst [vmem:[%s219 + $0x2] sm:$0x1] %v413
          %v415 = vld [vmem:[%s219 + $0x3] sm:$0x1]
          %v416 = vadd.f32 %v383, %v384
          %v417 = vrot.slane %v416, 4
          %v418 = vadd.f32 %v416, %v417
          %v419 = vrot.slane %v418, 2
          %v420 = vadd.f32 %v418, %v419
          %v421 = vrot.slane %v420, 1
          %v422 = vadd.f32 %v420, %v421
          %v423 = vadd.f32 %v415, %v422
          %424 = vst [vmem:[%s219 + $0x3] sm:$0x1] %v423
        $region48: #{tpu_custom_call.1} parent=27 // pred_fallthru
          _
        %s425 = sand.u32 %s98, 1
        %s426 = scalar_lea.sflag [#allocation4], %s425
        %s427 = sand.u32 %s98, 1
        %s428 = smul.addr %s427, 8
        %s429 = scalar_lea.vmem [#allocation7], %s428
        // Predicated region
        $region49: #{tpu_custom_call.1} parent=27 // pred_check
          %p430 = pneg %p108
        $region50: #{tpu_custom_call.1} parent=27 // pred_check_branch
          %432 = sbr.rel (%p430) target = $region52
        $region51: #{tpu_custom_call.1} parent=27 // pred_region
          %s434 = ssub.s32 128, 128
          %435 = vsyncadd %s426, %s434
          %s436 = smul.addr %s26, 128
          %s437 = scalar_lea.hbm %s2, %s436
          %s439 = sshll.u32 %s429, 4
          %s440 = int_to_ptr.vmem [resolvable:$true] %s439
          %442 = dma.vmem_to_hbm [thread:$0]  %s440, 128, %s437, %s426
        $region52: #{tpu_custom_call.1} parent=27 // pred_fallthru
          _
      $region28: #{tpu_custom_call.1} parent=5 // pred_fallthru
        _
      %p443 = scmp.le.s32.totalorder 2, %s17
      // Predicated region
      $region53: #{tpu_custom_call.1} parent=5 // pred_check
        %p444 = pneg %p443
      $region54: #{tpu_custom_call.1} parent=5 // pred_check_branch
        %446 = sbr.rel (%p444) target = $region56
      $region55: #{tpu_custom_call.1} parent=5 // pred_region
        %s447 = ssub.s32 %s17, 2
        // Predicated region
        $region57: #{tpu_custom_call.1} parent=55 // pred_check
          %p448 = pneg %p114
        $region58: #{tpu_custom_call.1} parent=55 // pred_check_branch
          %450 = sbr.rel (%p448) target = $region60
        $region59: #{tpu_custom_call.1} parent=55 // pred_region
          %s451 = sand.u32 %s99, 1
          %s452 = scalar_lea.sflag [#allocation4], %s451
          %s453 = sand.u32 %s99, 1
          %s454 = smul.addr %s453, 8
          %s455 = scalar_lea.vmem [#allocation7], %s454
          %456 = dma.done %s452, 128
        $region60: #{tpu_custom_call.1} parent=55 // pred_fallthru
          _
      $region56: #{tpu_custom_call.1} parent=5 // pred_fallthru
        _
    $region6: #{tpu_custom_call.1} parent=1 // loop_footer
      %s21 = sadd.s32 1, %s17
    $region7: #{tpu_custom_call.1} parent=1 // loop_footer_branch
      %16 = sbr.rel target = $region3
    $region8: #{tpu_custom_call.1} parent=1 // loop_exit
      _
    %457 = vsyncpa [#allocation3], 1
    %s458 = scalar_lea.sflag [#allocation3], 1
    %459 = vsyncpa %s458, 1
    %460 = vsyncpa [#allocation6], 1
    %s461 = scalar_lea.sflag [#allocation6], 1
    %462 = vsyncpa %s461, 1
    %463 = vsyncpa [#allocation4], 1
    %s464 = scalar_lea.sflag [#allocation4], 1
    %465 = vsyncpa %s464, 1

</llo_original>
